<compile_context>
chip_gen: v5e
topology: v5e:2x2
jax: 0.10.0
libtpu: 0.0.40
codegen_flags: <defaults>
</compile_context>

<pallas_src>
import jax
import jax.numpy as jnp
from jax.experimental import pallas as pl
from jax.experimental.pallas import tpu as pltpu


def _predict_y_kernel(x_in_ref, xg_ref, yg_ref, out_ref):
    # x_in_ref : (R, TW)     packed pixel coords (row s*G+g = width chunk g)
    # xg_ref   : (R, Sx+1)   packed x grid rows (each segment row repeated G times)
    # yg_ref   : (R, Sx+1)   packed y grid rows
    # out_ref  : (R, TW)     packed prediction tile
    xg = xg_ref[...]
    yg = yg_ref[...]
    R = xg.shape[0]
    Sx = xg.shape[1] - 1
    TW = x_in_ref.shape[1]

    x_in = x_in_ref[...]                                     # (R, TW), full sublanes

    # Slope / intercept precomputed once (tiny (R, Sx) arrays, one divide).
    divider = xg[:, 1:] - xg[:, :-1]
    divider = jnp.where(divider == 0.0, jnp.float32(0.0001), divider)
    yratio = (yg[:, 1:] - yg[:, :-1]) / divider              # (R, Sx)
    b = yg[:, :-1] - xg[:, :-1] * yratio                     # (R, Sx)

    acc = jnp.zeros((R, TW), jnp.float32)
    # Shared boundary comparisons: ge_j computed once for j = 0..Sx.
    ge_cur = x_in >= xg[:, 0:1]                              # ge_0
    for j in range(Sx):                                      # static unroll (Sx small)
        ge_next = x_in >= xg[:, j + 1:j + 2]                 # ge_{j+1}
        mask = ge_cur & jnp.logical_not(ge_next)             # [x_j, x_{j+1})
        if j == 0:
            mask = mask | jnp.logical_not(ge_cur)            # x_in <  x_first fixup
        if j == Sx - 1:
            mask = mask | ge_next                            # x_in >= x_last  fixup
        val = x_in * yratio[:, j:j + 1] + b[:, j:j + 1]      # 2 ops/elem
        acc = acc + jnp.where(mask, val, jnp.float32(0.0))
        ge_cur = ge_next

    out_ref[...] = acc.astype(out_ref.dtype)                 # lane-dense unmasked store


def _round_up(a, m):
    return ((a + m - 1) // m) * m


def predict_y_pallas(x_in, x_param, y_param, *, tile_w=1024):
    """x_in: (W,) f32, x_param/y_param: (Sy+1, Sx+1) f32 -> ypred (Sy, W) f32."""
    Sy = x_param.shape[0] - 1
    Sx = x_param.shape[1] - 1
    W = x_in.shape[0]
    assert tile_w % 128 == 0, "tile_w must be a multiple of 128"

    x_param = x_param.astype(jnp.float32)
    y_param = y_param.astype(jnp.float32)
    x_in = x_in.astype(jnp.float32)

    # Sublane packing factor: fill all 8 f32 sublanes when Sy divides 8.
    G = (8 // Sy) if Sy in (1, 2, 4) else 1
    R = Sy * G

    # Lane-dense tiling: chunk width padded to a multiple of 128, tile width
    # capped at tile_w (bounds vreg pressure of the unrolled Sx loop).
    wc_min = -(-W // G)                                      # ceil(W / G)
    tw = min(tile_w, _round_up(max(wc_min, 1), 128))
    Wc = _round_up(max(wc_min, 1), tw)                       # padded chunk width
    Wp = G * Wc                                              # padded total width
    n_tiles = Wc // tw

    # Pack x_in: pad to Wp, split into G chunks, replicate the chunk block Sy
    # times along sublanes -> row s*G+g holds chunk g.
    x_pad = jnp.pad(x_in, (0, Wp - W)) if Wp != W else x_in
    x_packed = jnp.tile(x_pad.reshape(G, Wc), (Sy, 1))       # (R, Wc)

    # Pack parameter rows: each of the Sy segment rows repeated G times.
    xg_packed = jnp.repeat(x_param[:-1, :], G, axis=0)       # (R, Sx+1)
    yg_packed = jnp.repeat(y_param[:-1, :], G, axis=0)       # (R, Sx+1)

    out = pl.pallas_call(
        _predict_y_kernel,
        out_shape=jax.ShapeDtypeStruct((R, Wc), jnp.float32),
        grid_spec=pltpu.PrefetchScalarGridSpec(
            num_scalar_prefetch=0,
            grid=(n_tiles,),
            in_specs=[
                pl.BlockSpec((R, tw), lambda i: (0, i)),          # packed x_in tile
                pl.BlockSpec((R, Sx + 1), lambda i: (0, 0)),      # packed x grid (full, tiny)
                pl.BlockSpec((R, Sx + 1), lambda i: (0, 0)),      # packed y grid (full, tiny)
            ],
            out_specs=pl.BlockSpec((R, tw), lambda i: (0, i)),
        ),
        compiler_params=pltpu.CompilerParams(
            dimension_semantics=("parallel",)),                   # >=2 steps shard across v7x TCs
    )(x_packed, xg_packed, yg_packed)

    # Unpack: row s*G+g, col c  ->  ypred[s, g*Wc + c]; drop width padding.
    return out.reshape(Sy, Wp)[:, :W]


def make_params(n_xsegments, n_ysegments, height, width):
    """Deterministic parameter / input construction mirroring set_image_size + _custom_init."""
    xmax = width + 1
    ymax = height + 1
    maxval = float(max(xmax, ymax))
    x_init = jnp.linspace(0.0, xmax / maxval, n_xsegments + 1, dtype=jnp.float32)
    x_param = jnp.broadcast_to(x_init[None, :], (n_ysegments + 1, n_xsegments + 1))
    y_init = jnp.linspace(0.0, ymax / maxval, n_ysegments + 1, dtype=jnp.float32)
    y_param = jnp.broadcast_to(y_init[:, None], (n_ysegments + 1, n_xsegments + 1))
    x_in = jnp.arange(1, width + 1, dtype=jnp.float32) / maxval
    return x_param, y_param, x_in


def predict_y_ref(x_in, x, y):
    """Pure-JAX reference reproducing _calc_xmask + _predict_y exactly."""
    x_in3 = x_in[:, None, None]
    lt = x_in3 < x[None, :-1, 1:]
    ge = x_in3 >= x[None, :-1, :-1]
    xmask = lt & ge
    mask_lt = x_in3 < x[None, :-1, 0:1]
    mask_ge = x_in3 >= x[None, :-1, -1:]
    xmask = xmask.at[:, :, -1:].set(xmask[:, :, -1:] | mask_ge)
    xmask = xmask.at[:, :, :1].set(xmask[:, :, :1] | mask_lt)
    divider = x[:-1, 1:] - x[:-1, :-1]
    divider = jnp.where(divider == 0.0, jnp.float32(0.0001), divider)
    yratio = (y[:-1, 1:] - y[:-1, :-1]) / divider
    ypred = ((x_in3 - x[None, :-1, :-1]) * xmask * yratio[None]
             + xmask * y[None, :-1, :-1])
    return ypred.sum(2).T


if __name__ == "__main__":
    # --- test 1: tiny module-default-ish setup (Sy=4 -> sublane packing G=2, single tile) ---
    n_xsegments, n_ysegments = 4, 4
    height, width = 16, 16

    # set_image(bw_array): bw_array only influences xact/yact (targets), not forward().
    key = jax.random.PRNGKey(0)
    bw_array = (jax.random.uniform(key, (height, width)) > 0.5).astype(jnp.float32)

    x_param, y_param, x_in = make_params(n_xsegments, n_ysegments, height, width)
    ypred = jax.block_until_ready(predict_y_pallas(x_in, x_param, y_param))
    expected = predict_y_ref(x_in, x_param, y_param)
    assert ypred.shape == (n_ysegments, width), ypred.shape
    assert jnp.allclose(ypred, expected, atol=1e-5, rtol=1e-5)

    # --- test 2: non-multiple-of-128 width + multi-step parallel grid (padding + tiling path) ---
    height2, width2 = 16, 300
    x_param2, y_param2, x_in2 = make_params(n_xsegments, n_ysegments, height2, width2)
    ypred2 = jax.block_until_ready(predict_y_pallas(x_in2, x_param2, y_param2, tile_w=128))
    expected2 = predict_y_ref(x_in2, x_param2, y_param2)
    assert ypred2.shape == (n_ysegments, width2), ypred2.shape
    assert jnp.allclose(ypred2, expected2, atol=1e-5, rtol=1e-5)

    # --- test 3: Sy that does not divide 8 (no sublane packing, G=1 path) ---
    n_ysegments3 = 3
    height3, width3 = 12, 200
    x_param3, y_param3, x_in3 = make_params(n_xsegments, n_ysegments3, height3, width3)
    ypred3 = jax.block_until_ready(predict_y_pallas(x_in3, x_param3, y_param3))
    expected3 = predict_y_ref(x_in3, x_param3, y_param3)
    assert ypred3.shape == (n_ysegments3, width3), ypred3.shape
    assert jnp.allclose(ypred3, expected3, atol=1e-5, rtol=1e-5)

    print("KERNEL_OK")
</pallas_src>

<mosaic_0001>
module attributes {stable_mosaic.version = 11 : i64} {
  func.func @_predict_y_kernel(%arg0: i32, %arg1: memref<8x128xf32, #tpu.memory_space<vmem>>, %arg2: memref<8x5xf32, #tpu.memory_space<vmem>>, %arg3: memref<8x5xf32, #tpu.memory_space<vmem>>, %arg4: memref<8x128xf32, #tpu.memory_space<vmem>>) attributes {dimension_semantics = [#tpu.dimension_semantics<parallel>], iteration_bounds = array<i64: 1>, scalar_prefetch = 0 : i64, scratch_operands = 0 : i64, tpu.core_type = #tpu.core_type<tc>, window_params = [{transform_indices = @transform_0, window_bounds = array<i64: 8, 128>}, {pipeline_mode = #tpu.pipeline_mode<synchronous>, transform_indices = @transform_1, window_bounds = array<i64: 8, 5>}, {pipeline_mode = #tpu.pipeline_mode<synchronous>, transform_indices = @transform_2, window_bounds = array<i64: 8, 5>}, {transform_indices = @transform_3, window_bounds = array<i64: 8, 128>}]} {
    %c0 = arith.constant 0 : index
    %c0_0 = arith.constant 0 : index
    %0 = vector.load %arg2[%c0, %c0_0] : memref<8x5xf32, #tpu.memory_space<vmem>>, vector<8x5xf32>
    %c0_1 = arith.constant 0 : index
    %c0_2 = arith.constant 0 : index
    %1 = vector.load %arg3[%c0_1, %c0_2] : memref<8x5xf32, #tpu.memory_space<vmem>>, vector<8x5xf32>
    %c0_3 = arith.constant 0 : index
    %c0_4 = arith.constant 0 : index
    %2 = vector.load %arg1[%c0_3, %c0_4] : memref<8x128xf32, #tpu.memory_space<vmem>>, vector<8x128xf32>
    %3 = vector.extract_strided_slice %0 {offsets = [0, 1], sizes = [8, 4], strides = [1, 1]} : vector<8x5xf32> to vector<8x4xf32>
    %4 = vector.extract_strided_slice %0 {offsets = [0, 0], sizes = [8, 4], strides = [1, 1]} : vector<8x5xf32> to vector<8x4xf32>
    %5 = arith.subf %3, %4 : vector<8x4xf32>
    %cst = arith.constant 0.000000e+00 : f32
    %6 = vector.broadcast %cst : f32 to vector<8x4xf32>
    %7 = arith.cmpf oeq, %5, %6 : vector<8x4xf32>
    %cst_5 = arith.constant 9.99999974E-5 : f32
    %8 = vector.broadcast %cst_5 : f32 to vector<8x4xf32>
    %9 = arith.select %7, %8, %5 : vector<8x4xi1>, vector<8x4xf32>
    %10 = vector.extract_strided_slice %1 {offsets = [0, 1], sizes = [8, 4], strides = [1, 1]} : vector<8x5xf32> to vector<8x4xf32>
    %11 = vector.extract_strided_slice %1 {offsets = [0, 0], sizes = [8, 4], strides = [1, 1]} : vector<8x5xf32> to vector<8x4xf32>
    %12 = arith.subf %10, %11 : vector<8x4xf32>
    %13 = arith.divf %12, %9 : vector<8x4xf32>
    %14 = vector.extract_strided_slice %1 {offsets = [0, 0], sizes = [8, 4], strides = [1, 1]} : vector<8x5xf32> to vector<8x4xf32>
    %15 = vector.extract_strided_slice %0 {offsets = [0, 0], sizes = [8, 4], strides = [1, 1]} : vector<8x5xf32> to vector<8x4xf32>
    %16 = arith.mulf %15, %13 : vector<8x4xf32>
    %17 = arith.subf %14, %16 : vector<8x4xf32>
    %cst_6 = arith.constant 0.000000e+00 : f32
    %18 = vector.broadcast %cst_6 : f32 to vector<8x128xf32>
    %19 = vector.extract_strided_slice %0 {offsets = [0, 0], sizes = [8, 1], strides = [1, 1]} : vector<8x5xf32> to vector<8x1xf32>
    %20 = vector.broadcast %19 : vector<8x1xf32> to vector<8x128xf32>
    %21 = arith.cmpf oge, %2, %20 : vector<8x128xf32>
    %22 = vector.extract_strided_slice %0 {offsets = [0, 1], sizes = [8, 1], strides = [1, 1]} : vector<8x5xf32> to vector<8x1xf32>
    %23 = vector.broadcast %22 : vector<8x1xf32> to vector<8x128xf32>
    %24 = arith.cmpf oge, %2, %23 : vector<8x128xf32>
    %cst_7 = arith.constant dense<true> : vector<8x128xi1>
    %25 = arith.xori %24, %cst_7 : vector<8x128xi1>
    %26 = arith.andi %21, %25 : vector<8x128xi1>
    %cst_8 = arith.constant dense<true> : vector<8x128xi1>
    %27 = arith.xori %21, %cst_8 : vector<8x128xi1>
    %28 = arith.ori %26, %27 : vector<8x128xi1>
    %29 = vector.extract_strided_slice %13 {offsets = [0, 0], sizes = [8, 1], strides = [1, 1]} : vector<8x4xf32> to vector<8x1xf32>
    %30 = vector.broadcast %29 : vector<8x1xf32> to vector<8x128xf32>
    %31 = arith.mulf %2, %30 : vector<8x128xf32>
    %32 = vector.extract_strided_slice %17 {offsets = [0, 0], sizes = [8, 1], strides = [1, 1]} : vector<8x4xf32> to vector<8x1xf32>
    %33 = vector.broadcast %32 : vector<8x1xf32> to vector<8x128xf32>
    %34 = arith.addf %31, %33 : vector<8x128xf32>
    %cst_9 = arith.constant 0.000000e+00 : f32
    %35 = vector.broadcast %cst_9 : f32 to vector<8x128xf32>
    %36 = arith.select %28, %34, %35 : vector<8x128xi1>, vector<8x128xf32>
    %37 = arith.addf %18, %36 : vector<8x128xf32>
    %38 = vector.extract_strided_slice %0 {offsets = [0, 2], sizes = [8, 1], strides = [1, 1]} : vector<8x5xf32> to vector<8x1xf32>
    %39 = vector.broadcast %38 : vector<8x1xf32> to vector<8x128xf32>
    %40 = arith.cmpf oge, %2, %39 : vector<8x128xf32>
    %cst_10 = arith.constant dense<true> : vector<8x128xi1>
    %41 = arith.xori %40, %cst_10 : vector<8x128xi1>
    %42 = arith.andi %24, %41 : vector<8x128xi1>
    %43 = vector.extract_strided_slice %13 {offsets = [0, 1], sizes = [8, 1], strides = [1, 1]} : vector<8x4xf32> to vector<8x1xf32>
    %44 = vector.broadcast %43 : vector<8x1xf32> to vector<8x128xf32>
    %45 = arith.mulf %2, %44 : vector<8x128xf32>
    %46 = vector.extract_strided_slice %17 {offsets = [0, 1], sizes = [8, 1], strides = [1, 1]} : vector<8x4xf32> to vector<8x1xf32>
    %47 = vector.broadcast %46 : vector<8x1xf32> to vector<8x128xf32>
    %48 = arith.addf %45, %47 : vector<8x128xf32>
    %cst_11 = arith.constant 0.000000e+00 : f32
    %49 = vector.broadcast %cst_11 : f32 to vector<8x128xf32>
    %50 = arith.select %42, %48, %49 : vector<8x128xi1>, vector<8x128xf32>
    %51 = arith.addf %37, %50 : vector<8x128xf32>
    %52 = vector.extract_strided_slice %0 {offsets = [0, 3], sizes = [8, 1], strides = [1, 1]} : vector<8x5xf32> to vector<8x1xf32>
    %53 = vector.broadcast %52 : vector<8x1xf32> to vector<8x128xf32>
    %54 = arith.cmpf oge, %2, %53 : vector<8x128xf32>
    %cst_12 = arith.constant dense<true> : vector<8x128xi1>
    %55 = arith.xori %54, %cst_12 : vector<8x128xi1>
    %56 = arith.andi %40, %55 : vector<8x128xi1>
    %57 = vector.extract_strided_slice %13 {offsets = [0, 2], sizes = [8, 1], strides = [1, 1]} : vector<8x4xf32> to vector<8x1xf32>
    %58 = vector.broadcast %57 : vector<8x1xf32> to vector<8x128xf32>
    %59 = arith.mulf %2, %58 : vector<8x128xf32>
    %60 = vector.extract_strided_slice %17 {offsets = [0, 2], sizes = [8, 1], strides = [1, 1]} : vector<8x4xf32> to vector<8x1xf32>
    %61 = vector.broadcast %60 : vector<8x1xf32> to vector<8x128xf32>
    %62 = arith.addf %59, %61 : vector<8x128xf32>
    %cst_13 = arith.constant 0.000000e+00 : f32
    %63 = vector.broadcast %cst_13 : f32 to vector<8x128xf32>
    %64 = arith.select %56, %62, %63 : vector<8x128xi1>, vector<8x128xf32>
    %65 = arith.addf %51, %64 : vector<8x128xf32>
    %66 = vector.extract_strided_slice %0 {offsets = [0, 4], sizes = [8, 1], strides = [1, 1]} : vector<8x5xf32> to vector<8x1xf32>
    %67 = vector.broadcast %66 : vector<8x1xf32> to vector<8x128xf32>
    %68 = arith.cmpf oge, %2, %67 : vector<8x128xf32>
    %cst_14 = arith.constant dense<true> : vector<8x128xi1>
    %69 = arith.xori %68, %cst_14 : vector<8x128xi1>
    %70 = arith.andi %54, %69 : vector<8x128xi1>
    %71 = arith.ori %70, %68 : vector<8x128xi1>
    %72 = vector.extract_strided_slice %13 {offsets = [0, 3], sizes = [8, 1], strides = [1, 1]} : vector<8x4xf32> to vector<8x1xf32>
    %73 = vector.broadcast %72 : vector<8x1xf32> to vector<8x128xf32>
    %74 = arith.mulf %2, %73 : vector<8x128xf32>
    %75 = vector.extract_strided_slice %17 {offsets = [0, 3], sizes = [8, 1], strides = [1, 1]} : vector<8x4xf32> to vector<8x1xf32>
    %76 = vector.broadcast %75 : vector<8x1xf32> to vector<8x128xf32>
    %77 = arith.addf %74, %76 : vector<8x128xf32>
    %cst_15 = arith.constant 0.000000e+00 : f32
    %78 = vector.broadcast %cst_15 : f32 to vector<8x128xf32>
    %79 = arith.select %71, %77, %78 : vector<8x128xi1>, vector<8x128xf32>
    %80 = arith.addf %65, %79 : vector<8x128xf32>
    %c0_16 = arith.constant 0 : index
    %c0_17 = arith.constant 0 : index
    %81 = vector.load %arg4[%c0_16, %c0_17] : memref<8x128xf32, #tpu.memory_space<vmem>>, vector<8x128xf32>
    tpu.vector_store %arg4[%c0_16, %c0_17], %80 {strides = array<i32>} : memref<8x128xf32, #tpu.memory_space<vmem>>, vector<8x128xf32>,
    return
  }
  func.func @transform_0(%arg0: i32) -> (i32, i32) {
    %c0_i32 = arith.constant 0 : i32
    %c0_i32_0 = arith.constant 0 : i32
    return %c0_i32, %arg0 : i32, i32
  }
  func.func @transform_1(%arg0: i32) -> (i32, i32) {
    %c0_i32 = arith.constant 0 : i32
    %c0_i32_0 = arith.constant 0 : i32
    %c0_i32_1 = arith.constant 0 : i32
    return %c0_i32, %c0_i32_0 : i32, i32
  }
  func.func @transform_2(%arg0: i32) -> (i32, i32) {
    %c0_i32 = arith.constant 0 : i32
    %c0_i32_0 = arith.constant 0 : i32
    %c0_i32_1 = arith.constant 0 : i32
    return %c0_i32, %c0_i32_0 : i32, i32
  }
  func.func @transform_3(%arg0: i32) -> (i32, i32) {
    %c0_i32 = arith.constant 0 : i32
    %c0_i32_0 = arith.constant 0 : i32
    return %c0_i32, %arg0 : i32, i32
  }
}

</mosaic_0001>

<llo_original>
// kernel: tpu_custom_call.1
$region0: #{tpu_custom_call.1}
  #allocation0 [shape = 'u32[]', space=smem, size = 0x4, offset = 0x4, fixed_abs, tag = 'smem constant byte address 0x4 - core index']
  #allocation1 [shape = 'u32[72,128]{1,0:T(1,128)}', space=vmem, size = 0x9000, scoped, tag = 'internal scratch']
  %s0 = inlined_call_operand.hbm [shape: f32[8,128], index: 0, kind: input, shape index: {}]
  %s1 = inlined_call_operand.hbm [shape: f32[8,5], index: 1, kind: input, shape index: {}]
  %s2 = inlined_call_operand.hbm [shape: f32[8,5], index: 2, kind: input, shape index: {}]
  %s3 = inlined_call_operand.hbm [shape: f32[8,128], index: 3, kind: output, shape index: {}]
  %s4 = sld [smem:[#allocation0]]
  $region34: #{tpu_custom_call.1} parent=0
    _
  %s6 = ssub.s32 1, %s4
  %s7 = scalar_select 0, %s6, %s4
  $region1: #{tpu_custom_call.1} parent=0
    #allocation2 [shape = 'u8[4096]{0}', space=vmem, size = 0x1000, scoped, tag = 'input window, operand 0, single buffered']
    #allocation3 [shape = 's32[1]{0}', space=sflag, size = 0x4, scoped, tag = 'scoped memory for tpu_custom_call.1']
    #allocation4 [shape = 's32[1]{0}', space=sflag, size = 0x4, scoped, tag = 'scoped memory for tpu_custom_call.1']
    #allocation5 [shape = 'u8[4096]{0}', space=vmem, size = 0x1000, scoped, tag = 'input window, operand 1, single buffered']
    #allocation6 [shape = 's32[1]{0}', space=sflag, size = 0x4, scoped, tag = 'scoped memory for tpu_custom_call.1']
    #allocation7 [shape = 'u8[4096]{0}', space=vmem, size = 0x1000, scoped, tag = 'input window, operand 2, single buffered']
    #allocation8 [shape = 'u8[4096]{0}', space=vmem, size = 0x1000, scoped, tag = 'output window, operand 0, single buffered']
    %8 = vsyncpa [#allocation3], 0
    %9 = vsyncpa [#allocation6], 0
    %10 = vsyncpa [#allocation4], 0
    // Predicated region
    $region2: #{tpu_custom_call.1} parent=1 // pred_check
      _
    $region3: #{tpu_custom_call.1} parent=1 // pred_check_branch
      %12 = sbr.rel (0) target = $region5
    $region4: #{tpu_custom_call.1} parent=1 // pred_region
      %14 = vsyncadd [#allocation3], 0
      %s16 = sshll.u32 %s0, 4
      %s17 = int_to_ptr.hbm [resolvable:$true] %s16
      %s18 = sshll.u32 [#allocation2], 4
      %s19 = int_to_ptr.vmem [resolvable:$true] %s18
      %21 = dma.hbm_to_vmem [thread:$0]  %s17, 128, %s19, [#allocation3]
    $region5: #{tpu_custom_call.1} parent=1 // pred_fallthru
      _
    // Predicated region
    $region6: #{tpu_custom_call.1} parent=1 // pred_check
      _
    $region7: #{tpu_custom_call.1} parent=1 // pred_check_branch
      %23 = sbr.rel (0) target = $region9
    $region8: #{tpu_custom_call.1} parent=1 // pred_region
      %25 = vsyncadd [#allocation6], 0
      %s27 = sshll.u32 %s1, 4
      %s28 = int_to_ptr.hbm [resolvable:$true] %s27
      %s29 = sshll.u32 [#allocation5], 4
      %s30 = int_to_ptr.vmem [resolvable:$true] %s29
      %32 = dma.hbm_to_vmem [thread:$0]  %s28, 128, %s30, [#allocation6]
    $region9: #{tpu_custom_call.1} parent=1 // pred_fallthru
      _
    // Predicated region
    $region10: #{tpu_custom_call.1} parent=1 // pred_check
      _
    $region11: #{tpu_custom_call.1} parent=1 // pred_check_branch
      %34 = sbr.rel (0) target = $region13
    $region12: #{tpu_custom_call.1} parent=1 // pred_region
      %36 = vsyncadd [#allocation6], 0
      %s38 = sshll.u32 %s2, 4
      %s39 = int_to_ptr.hbm [resolvable:$true] %s38
      %s40 = sshll.u32 [#allocation7], 4
      %s41 = int_to_ptr.vmem [resolvable:$true] %s40
      %43 = dma.hbm_to_vmem [thread:$0]  %s39, 128, %s41, [#allocation6]
    $region13: #{tpu_custom_call.1} parent=1 // pred_fallthru
      _
    // Predicated region
    $region14: #{tpu_custom_call.1} parent=1 // pred_check
      _
    $region15: #{tpu_custom_call.1} parent=1 // pred_check_branch
      %45 = sbr.rel (0) target = $region17
    $region16: #{tpu_custom_call.1} parent=1 // pred_region
      %47 = dma.done [#allocation3], 128
    $region17: #{tpu_custom_call.1} parent=1 // pred_fallthru
      _
    // Predicated region
    $region18: #{tpu_custom_call.1} parent=1 // pred_check
      _
    $region19: #{tpu_custom_call.1} parent=1 // pred_check_branch
      %49 = sbr.rel (0) target = $region21
    $region20: #{tpu_custom_call.1} parent=1 // pred_region
      %51 = dma.done [#allocation6], 128
    $region21: #{tpu_custom_call.1} parent=1 // pred_fallthru
      _
    // Predicated region
    $region22: #{tpu_custom_call.1} parent=1 // pred_check
      _
    $region23: #{tpu_custom_call.1} parent=1 // pred_check_branch
      %53 = sbr.rel (0) target = $region25
    $region24: #{tpu_custom_call.1} parent=1 // pred_region
      %55 = dma.done [#allocation6], 128
    $region25: #{tpu_custom_call.1} parent=1 // pred_fallthru
      _
    %v56 = vld [vmem:[#allocation5] sm:$0xff]
    %v57 = vld [vmem:[#allocation7] sm:$0xff]
    %v58 = vld [vmem:[#allocation2] sm:$0xff]
    %60 = vrot.lane.b32.xlu0 %v56, 1
    %v61 = vpop.permute.xlu0 %60
    %v63 = vsub.f32 %v56, %v61
    %vm64 = vcmp.eq.f32.partialorder %v63, 0.0
    %v65 = vsel %vm64, 0.0001, %v63
    %67 = vrot.lane.b32.xlu0 %v57, 1
    %v68 = vpop.permute.xlu0 %67
    %v70 = vsub.f32 %v57, %v68
    %v71 = vrcp.pop %v65
    %v72 = vmul.f32 %v65, %v71
    %v73 = vsub.f32 1.0, %v72
    %v74 = vmul.f32 %v71, %v73
    %v75 = vadd.f32 %v71, %v74
    %vm76 = vweird.f32 %v65
    %vm77 = vweird.f32 %v71
    %vm78 = vmor %vm76, %vm77
    %v79 = vsel %vm78, %v71, %v75
    %v80 = vand.u32 2147483647, %v65
    %vm81 = vcmp.eq.f32.partialorder %v80, 8.507059e+37
    %v82 = vand.u32 %v65, 2147483648
    %v83 = vor.u32 1.1754944e-38, %v82
    %v84 = vsel %vm81, %v83, %v79
    %v85 = vmul.f32 %v70, %v84
    %87 = vrot.lane.b32.xlu0 %v85, 127
    %v88 = vpop.permute.xlu0 %87
    %v90 = vmul.f32 %v56, %v88
    %v91 = vsub.f32 %v57, %v90
    %92 = vset.pattern.permute.xlu0 0
    %93 = vperm.xlu0 %92, %v56
    %v94 = vpop.permute.xlu0 %93
    %vm96 = vcmp.ge.f32.partialorder %v58, %v94
    %97 = vset.pattern.permute.xlu0 1
    %98 = vperm.xlu0 %97, %v56
    %v99 = vpop.permute.xlu0 %98
    %vm101 = vcmp.ge.f32.partialorder %v58, %v99
    %vm102 = vmxor %vm101, 1
    %vm103 = vmand %vm96, %vm102
    %vm104 = vmxor %vm96, 1
    %vm105 = vmor %vm103, %vm104
    %106 = vset.pattern.permute.xlu0 1
    %107 = vperm.xlu0 %106, %v85
    %v108 = vpop.permute.xlu0 %107
    %v110 = vmul.f32 %v58, %v108
    %112 = vset.pattern.permute.xlu0 0
    %113 = vperm.xlu0 %112, %v91
    %v114 = vpop.permute.xlu0 %113
    %v116 = vadd.f32 %v110, %v114
    %v117 = vsel %vm105, %v116, 0.0
    %v118 = vadd.f32 %v117, 0.0
    %119 = vset.pattern.permute.xlu0 2
    %120 = vperm.xlu0 %119, %v56
    %v121 = vpop.permute.xlu0 %120
    %vm123 = vcmp.ge.f32.partialorder %v58, %v121
    %vm124 = vmxor %vm123, 1
    %vm125 = vmand %vm101, %vm124
    %126 = vset.pattern.permute.xlu0 2
    %127 = vperm.xlu0 %126, %v85
    %v128 = vpop.permute.xlu0 %127
    %v130 = vmul.f32 %v58, %v128
    %131 = vset.pattern.permute.xlu0 1
    %132 = vperm.xlu0 %131, %v91
    %v133 = vpop.permute.xlu0 %132
    %v135 = vadd.f32 %v130, %v133
    %v136 = vsel %vm125, %v135, 0.0
    %v137 = vadd.f32 %v118, %v136
    %138 = vset.pattern.permute.xlu0 3
    %139 = vperm.xlu0 %138, %v56
    %v140 = vpop.permute.xlu0 %139
    %vm142 = vcmp.ge.f32.partialorder %v58, %v140
    %vm143 = vmxor %vm142, 1
    %vm144 = vmand %vm123, %vm143
    %145 = vset.pattern.permute.xlu0 3
    %146 = vperm.xlu0 %145, %v85
    %v147 = vpop.permute.xlu0 %146
    %v149 = vmul.f32 %v58, %v147
    %150 = vset.pattern.permute.xlu0 2
    %151 = vperm.xlu0 %150, %v91
    %v152 = vpop.permute.xlu0 %151
    %v154 = vadd.f32 %v149, %v152
    %v155 = vsel %vm144, %v154, 0.0
    %v156 = vadd.f32 %v137, %v155
    %157 = vset.pattern.permute.xlu0 4
    %158 = vperm.xlu0 %157, %v56
    %v159 = vpop.permute.xlu0 %158
    %vm161 = vcmp.ge.f32.partialorder %v58, %v159
    %vm162 = vmxor %vm161, 1
    %vm163 = vmand %vm142, %vm162
    %vm164 = vmor %vm163, %vm161
    %165 = vset.pattern.permute.xlu0 4
    %166 = vperm.xlu0 %165, %v85
    %v167 = vpop.permute.xlu0 %166
    %v169 = vmul.f32 %v58, %v167
    %170 = vset.pattern.permute.xlu0 3
    %171 = vperm.xlu0 %170, %v91
    %v172 = vpop.permute.xlu0 %171
    %v174 = vadd.f32 %v169, %v172
    %v175 = vsel %vm164, %v174, 0.0
    %v176 = vadd.f32 %v156, %v175
    %177 = vst [vmem:[#allocation8] sm:$0xff] %v176
    // Predicated region
    $region26: #{tpu_custom_call.1} parent=1 // pred_check
      _
    $region27: #{tpu_custom_call.1} parent=1 // pred_check_branch
      %179 = sbr.rel (0) target = $region29
    $region28: #{tpu_custom_call.1} parent=1 // pred_region
      %181 = vsyncadd [#allocation4], 0
      %s183 = sshll.u32 [#allocation8], 4
      %s184 = int_to_ptr.vmem [resolvable:$true] %s183
      %s185 = sshll.u32 %s3, 4
      %s186 = int_to_ptr.hbm [resolvable:$true] %s185
      %188 = dma.vmem_to_hbm [thread:$0]  %s184, 128, %s186, [#allocation4]
    $region29: #{tpu_custom_call.1} parent=1 // pred_fallthru
      _
    // Predicated region
    $region30: #{tpu_custom_call.1} parent=1 // pred_check
      _
    $region31: #{tpu_custom_call.1} parent=1 // pred_check_branch
      %190 = sbr.rel (0) target = $region33
    $region32: #{tpu_custom_call.1} parent=1 // pred_region
      %192 = dma.done [#allocation4], 128
    $region33: #{tpu_custom_call.1} parent=1 // pred_fallthru
      _
    %193 = vsyncpa [#allocation3], 1
    %194 = vsyncpa [#allocation6], 1
    %195 = vsyncpa [#allocation4], 1

</llo_original>
